<compile_context>
chip_gen: v7x
topology: tpu7x:2x2x1
jax: 0.10.0
libtpu: 0.0.40
codegen_flags: <defaults>
</compile_context>

<pallas_src>
import jax
import jax.numpy as jnp
import numpy as np
from jax import lax
from jax.experimental import pallas as pl
from jax.experimental.pallas import tpu as pltpu


# ---------------- Pass 1: per-row sum of squares ----------------
def _sumsq_kernel(x_ref, ss_ref):
    # x_ref : (TILE, H) original dtype   ss_ref : (TILE, 1) f32
    x = x_ref[...].astype(jnp.float32)
    ss_ref[...] = jnp.sum(x * x, axis=-1, keepdims=True)


# ---------------- Pass 2: broadcast multiply in original dtype ----------------
def _scale_kernel(x_ref, s_ref, o_ref):
    # x_ref: (TILE, H) dtype, s_ref: (TILE, 1) dtype, o_ref: (TILE, H) dtype
    o_ref[...] = x_ref[...] * s_ref[...]


def _device_budgets():
    """Per-generation (block budget bytes, vmem_limit_bytes)."""
    kind = ""
    try:
        kind = jax.devices()[0].device_kind.lower()
    except Exception:
        pass
    if ("v5" in kind) or ("v6" in kind):
        # 128 MiB physical VMEM: big blocks amortize the ~0.35us/step overhead.
        return 12 * 1024 * 1024, 96 * 1024 * 1024
    # v7x (64 MiB VMEM per TC) or unknown: conservative.
    return 6 * 1024 * 1024, 48 * 1024 * 1024


def _choose_tile_rows(n_rows, h, itemsize, budget_bytes, pack):
    if n_rows <= pack:
        return n_rows                               # full-dim block (always legal)
    max_rows = max(pack, budget_bytes // max(1, h * itemsize))
    tile = (min(max_rows, n_rows) // pack) * pack   # multiple of sublane pack, <= n_rows
    return max(pack, tile)


@jax.jit
def _verifier_impl(hidden_states, namespace_ids):
    B, S, H = hidden_states.shape
    dtype = hidden_states.dtype
    R = B * S
    itemsize = jnp.dtype(dtype).itemsize
    pack = max(8, 32 // itemsize)                   # 8 f32 / 16 bf16 / 32 int8
    budget, vmem_limit = _device_budgets()
    tile = _choose_tile_rows(R, H, itemsize, budget, pack)
    grid = (pl.cdiv(R, tile),)

    x = hidden_states.reshape(R, H)                 # free: contiguous leading-dim merge
    trust = namespace_ids.reshape(R).astype(jnp.int32)

    cp = pltpu.CompilerParams(
        dimension_semantics=("parallel",),          # shard rows across v7x's 2 TCs
        vmem_limit_bytes=vmem_limit,
    )

    # -------- Pass 1: per-row sum of squares (original-dtype HBM traffic) --------
    sumsq = pl.pallas_call(
        _sumsq_kernel,
        out_shape=jax.ShapeDtypeStruct((R, 1), jnp.float32),
        grid=grid,
        in_specs=[pl.BlockSpec((tile, H), lambda i: (i, 0))],
        out_specs=pl.BlockSpec((tile, 1), lambda i: (i, 0)),
        compiler_params=cp,
    )(x)

    # -------- Stats + per-row scale on the tiny (R,) array (plain JAX) --------
    norms = jnp.sqrt(sumsq[:, 0])
    mean = jnp.mean(norms)
    if R > 1:
        # Two-pass unbiased std (torch.std default, N-1).  f32 accumulation;
        # XLA lowers the reduce as a tree of partials which keeps it stable
        # for typical B*S.  (For extreme R a blocked pairwise sum would help.)
        std = jnp.sqrt(jnp.sum((norms - mean) ** 2) / (R - 1))
    else:
        # torch.std gives NaN here and NaN > x is False -> nothing leaks.
        std = jnp.float32(0.0)
    thr = mean + 2.0 * std
    is_leak = jnp.logical_and(trust <= 60, norms > thr)
    scale = jnp.where(jnp.logical_and(is_leak, trust <= 40),
                      jnp.float32(0.1),
                      jnp.where(is_leak, jnp.float32(0.5), jnp.float32(1.0)))
    any_leak = jnp.any(is_leak)
    scale2d = scale.astype(dtype).reshape(R, 1)

    # -------- Pass 2: broadcast multiply; skipped when nothing leaks --------
    def _run_scale_pass():
        return pl.pallas_call(
            _scale_kernel,
            out_shape=jax.ShapeDtypeStruct((R, H), dtype),
            grid=grid,
            in_specs=[pl.BlockSpec((tile, H), lambda i: (i, 0)),
                      pl.BlockSpec((tile, 1), lambda i: (i, 0))],
            out_specs=pl.BlockSpec((tile, H), lambda i: (i, 0)),
            compiler_params=cp,
        )(x, scale2d)

    out = lax.cond(any_leak, _run_scale_pass, lambda: x)
    return out.reshape(B, S, H)


def residual_stream_verifier(hidden_states, namespace_ids):
    """Pallas implementation of ResidualStreamVerifier.forward."""
    if namespace_ids is None:
        return hidden_states
    return _verifier_impl(hidden_states, namespace_ids)


def _reference(hidden_states, namespace_ids):
    """Pure-numpy reference mirroring the PyTorch code."""
    x = np.asarray(hidden_states, dtype=np.float32)
    ns = np.asarray(namespace_ids)
    norms = np.linalg.norm(x, axis=-1)
    mean = norms.mean()
    std = norms.std(ddof=1)          # torch.std default is unbiased
    thr = mean + 2.0 * std
    out = x.copy()
    B, S, _ = x.shape
    for b in range(B):
        for s in range(S):
            t = int(ns[b, s])
            if t <= 60 and norms[b, s] > thr:
                out[b, s] *= 0.1 if t <= 40 else 0.5
    return out


if __name__ == "__main__":
    B, S, H = 2, 8, 32
    key = jax.random.PRNGKey(0)
    k_x, k_ns = jax.random.split(key, 2)

    hidden_states = jax.random.normal(k_x, (B, S, H), dtype=jnp.float32)
    # Inject strongly-leaking positions so the cleaning path runs.
    hidden_states = hidden_states.at[0, 3].multiply(20.0)
    hidden_states = hidden_states.at[1, 5].multiply(25.0)

    namespace_ids = jax.random.randint(k_ns, (B, S), 0, 100, dtype=jnp.int32)
    namespace_ids = namespace_ids.at[0, 3].set(30)   # trust <= 40 -> 0.1 scale
    namespace_ids = namespace_ids.at[1, 5].set(55)   # trust <= 60 -> 0.5 scale

    # f32 path with leaks.
    out = jax.block_until_ready(residual_stream_verifier(hidden_states, namespace_ids))
    ref = _reference(np.asarray(hidden_states), np.asarray(namespace_ids))
    np.testing.assert_allclose(np.asarray(out), ref, rtol=1e-5, atol=1e-5)

    # No-leak fast path (all trusted): pass 2 is skipped, output == input exactly.
    hs_plain = jax.random.normal(k_x, (B, S, H), dtype=jnp.float32)
    ns_plain = jnp.full((B, S), 90, dtype=jnp.int32)
    out_plain = jax.block_until_ready(residual_stream_verifier(hs_plain, ns_plain))
    np.testing.assert_array_equal(np.asarray(out_plain), np.asarray(hs_plain))

    # Ragged shapes: R = 3*7 = 21 (not a multiple of the sublane pack), H = 24 (< 128).
    Br, Sr, Hr = 3, 7, 24
    hs_r = jax.random.normal(jax.random.PRNGKey(1), (Br, Sr, Hr), dtype=jnp.float32)
    hs_r = hs_r.at[2, 1].multiply(30.0)
    ns_r = jax.random.randint(jax.random.PRNGKey(2), (Br, Sr), 0, 100, dtype=jnp.int32)
    ns_r = ns_r.at[2, 1].set(10)
    out_r = jax.block_until_ready(residual_stream_verifier(hs_r, ns_r))
    ref_r = _reference(np.asarray(hs_r), np.asarray(ns_r))
    np.testing.assert_allclose(np.asarray(out_r), ref_r, rtol=1e-5, atol=1e-5)

    # bf16 path: HBM traffic / output stay bf16, f32 accumulation only in pass 1.
    hs_bf16 = hidden_states.astype(jnp.bfloat16)
    out_bf16 = jax.block_until_ready(residual_stream_verifier(hs_bf16, namespace_ids))
    assert out_bf16.dtype == jnp.bfloat16 and out_bf16.shape == (B, S, H)
    ref_bf16 = _reference(np.asarray(hs_bf16.astype(jnp.float32)),
                          np.asarray(namespace_ids))
    np.testing.assert_allclose(np.asarray(out_bf16.astype(jnp.float32)), ref_bf16,
                               rtol=2e-2, atol=2e-2)

    # namespace_ids is None early-return path.
    assert residual_stream_verifier(hidden_states, None) is hidden_states

    print("KERNEL_OK")
</pallas_src>

<mosaic_0001>
module attributes {stable_mosaic.version = 11 : i64} {
  func.func @_sumsq_kernel(%arg0: i32, %arg1: memref<16x32xf32, #tpu.memory_space<vmem>>, %arg2: memref<16x1xf32, #tpu.memory_space<vmem>>) attributes {dimension_semantics = [#tpu.dimension_semantics<parallel>], iteration_bounds = array<i64: 1>, scalar_prefetch = 0 : i64, scratch_operands = 0 : i64, tpu.core_type = #tpu.core_type<tc>, window_params = [{transform_indices = @transform_0, window_bounds = array<i64: 16, 32>}, {transform_indices = @transform_1, window_bounds = array<i64: 16, 1>}]} {
    %c0 = arith.constant 0 : index
    %c0_0 = arith.constant 0 : index
    %0 = vector.load %arg1[%c0, %c0_0] : memref<16x32xf32, #tpu.memory_space<vmem>>, vector<16x32xf32>
    %1 = arith.mulf %0, %0 : vector<16x32xf32>
    %cst = arith.constant dense<0.000000e+00> : vector<16xf32>
    %2 = vector.multi_reduction <add>, %1, %cst [1] : vector<16x32xf32> to vector<16xf32>
    %3 = vector.shape_cast %2 : vector<16xf32> to vector<16x1xf32>
    %c0_1 = arith.constant 0 : index
    %c0_2 = arith.constant 0 : index
    %4 = vector.load %arg2[%c0_1, %c0_2] : memref<16x1xf32, #tpu.memory_space<vmem>>, vector<16x1xf32>
    tpu.vector_store %arg2[%c0_1, %c0_2], %3 {strides = array<i32>} : memref<16x1xf32, #tpu.memory_space<vmem>>, vector<16x1xf32>,
    return
  }
  func.func @transform_0(%arg0: i32) -> (i32, i32) {
    %c0_i32 = arith.constant 0 : i32
    %c0_i32_0 = arith.constant 0 : i32
    return %arg0, %c0_i32 : i32, i32
  }
  func.func @transform_1(%arg0: i32) -> (i32, i32) {
    %c0_i32 = arith.constant 0 : i32
    %c0_i32_0 = arith.constant 0 : i32
    return %arg0, %c0_i32 : i32, i32
  }
}

module attributes {stable_mosaic.version = 11 : i64} {
  func.func @_scale_kernel(%arg0: i32, %arg1: memref<16x32xf32, #tpu.memory_space<vmem>>, %arg2: memref<16x1xf32, #tpu.memory_space<vmem>>, %arg3: memref<16x32xf32, #tpu.memory_space<vmem>>) attributes {dimension_semantics = [#tpu.dimension_semantics<parallel>], iteration_bounds = array<i64: 1>, scalar_prefetch = 0 : i64, scratch_operands = 0 : i64, tpu.core_type = #tpu.core_type<tc>, window_params = [{transform_indices = @transform_0, window_bounds = array<i64: 16, 32>}, {transform_indices = @transform_1, window_bounds = array<i64: 16, 1>}, {transform_indices = @transform_2, window_bounds = array<i64: 16, 32>}]} {
    %c0 = arith.constant 0 : index
    %c0_0 = arith.constant 0 : index
    %0 = vector.load %arg1[%c0, %c0_0] : memref<16x32xf32, #tpu.memory_space<vmem>>, vector<16x32xf32>
    %c0_1 = arith.constant 0 : index
    %c0_2 = arith.constant 0 : index
    %1 = vector.load %arg2[%c0_1, %c0_2] : memref<16x1xf32, #tpu.memory_space<vmem>>, vector<16x1xf32>
    %2 = vector.broadcast %1 : vector<16x1xf32> to vector<16x32xf32>
    %3 = arith.mulf %0, %2 : vector<16x32xf32>
    %c0_3 = arith.constant 0 : index
    %c0_4 = arith.constant 0 : index
    %4 = vector.load %arg3[%c0_3, %c0_4] : memref<16x32xf32, #tpu.memory_space<vmem>>, vector<16x32xf32>
    tpu.vector_store %arg3[%c0_3, %c0_4], %3 {strides = array<i32>} : memref<16x32xf32, #tpu.memory_space<vmem>>, vector<16x32xf32>,
    return
  }
  func.func @transform_0(%arg0: i32) -> (i32, i32) {
    %c0_i32 = arith.constant 0 : i32
    %c0_i32_0 = arith.constant 0 : i32
    return %arg0, %c0_i32 : i32, i32
  }
  func.func @transform_1(%arg0: i32) -> (i32, i32) {
    %c0_i32 = arith.constant 0 : i32
    %c0_i32_0 = arith.constant 0 : i32
    return %arg0, %c0_i32 : i32, i32
  }
  func.func @transform_2(%arg0: i32) -> (i32, i32) {
    %c0_i32 = arith.constant 0 : i32
    %c0_i32_0 = arith.constant 0 : i32
    return %arg0, %c0_i32 : i32, i32
  }
}

</mosaic_0001>

<llo_original>
// kernel: _verifier_impl.1
$region0: #{_verifier_impl.1}
  #allocation0 [shape = 'u32[]', space=smem, size = 0x4, offset = 0x4, fixed_abs, tag = 'smem constant byte address 0x4 - core index']
  #allocation1 [shape = 'u32[144,128]{1,0:T(1,128)}', space=vmem, size = 0x12000, scoped, tag = 'internal scratch']
  %s0 = inlined_call_operand.vmem [shape: f32[16,32], index: 0, kind: input, shape index: {}]
  %s1 = inlined_call_operand.vmem [shape: f32[16,1], index: 1, kind: output, shape index: {}]
  %s2 = sld [smem:[#allocation0]]
  $region14: #{_verifier_impl.1} parent=0
    _
  %s4 = ssub.s32 1, %s2
  %s5 = scalar_select 0, %s4, %s2
  // Predicated region
  $region2: #{_verifier_impl.1} parent=0 // pred_check
    _
  $region3: #{_verifier_impl.1} parent=0 // pred_check_branch
    %7 = sbr.rel (0) target = $region5
  $region4: #{_verifier_impl.1} parent=0 // pred_region
    _
  $region5: #{_verifier_impl.1} parent=0 // pred_fallthru
    _
  %v8 = vld [vmem:[%s0] sm:$0xff]
  %v9 = vld [vmem:[%s0 + $0x8] sm:$0xff]
  %v10 = vmul.f32 %v8, %v8
  %v11 = vmul.f32 %v9, %v9
  %vm12 = vcmask 261120
  %v13 = vsel %vm12, %v10, 0.0
  %14 = vadd.xlane.f32.xlu0 %v13
  %v15 = vpop.xlane.xlu0 %14
  %v16 = vsel %vm12, %v11, 0.0
  %17 = vadd.xlane.f32.xlu0 %v16
  %v18 = vpop.xlane.xlu0 %17
  %vm19 = vcmask 7168
  %20 = vst.msk [vmem:[%s1] sm:$0xff] %vm19, %v15
  %21 = vst.msk [vmem:[%s1 + $0x8] sm:$0xff] %vm19, %v18
  // Predicated region
  $region6: #{_verifier_impl.1} parent=0 // pred_check
    _
  $region7: #{_verifier_impl.1} parent=0 // pred_check_branch
    %23 = sbr.rel (0) target = $region9
  $region8: #{_verifier_impl.1} parent=0 // pred_region
    _
  $region9: #{_verifier_impl.1} parent=0 // pred_fallthru
    _
  // Predicated region
  $region10: #{_verifier_impl.1} parent=0 // pred_check
    _
  $region11: #{_verifier_impl.1} parent=0 // pred_check_branch
    %25 = sbr.rel (0) target = $region13
  $region12: #{_verifier_impl.1} parent=0 // pred_region
    _
  $region13: #{_verifier_impl.1} parent=0 // pred_fallthru
    _

// kernel: branch_1_fun.3
$region0: #{branch_1_fun.3}
  #allocation0 [shape = 'u32[]', space=smem, size = 0x4, offset = 0x4, fixed_abs, tag = 'smem constant byte address 0x4 - core index']
  #allocation1 [shape = 'u32[144,128]{1,0:T(1,128)}', space=vmem, size = 0x12000, scoped, tag = 'internal scratch']
  %s0 = inlined_call_operand.vmem [shape: f32[16,32], index: 0, kind: input, shape index: {}]
  %s1 = inlined_call_operand.vmem [shape: f32[16,1], index: 1, kind: input, shape index: {}]
  %s2 = inlined_call_operand.hbm [shape: f32[16,32], index: 2, kind: output, shape index: {}]
  %s3 = sld [smem:[#allocation0]]
  $region18: #{branch_1_fun.3} parent=0
    _
  %s5 = ssub.s32 1, %s3
  %s6 = scalar_select 0, %s5, %s3
  $region1: #{branch_1_fun.3} parent=0
    #allocation2 [shape = 'u8[8192]{0}', space=vmem, size = 0x2000, scoped, tag = 'output window, operand 0, single buffered']
    #allocation3 [shape = 's32[1]{0}', space=sflag, size = 0x4, scoped, tag = 'scoped memory for branch_1_fun.3']
    %7 = vsyncpa [#allocation3], 0
    // Predicated region
    $region2: #{branch_1_fun.3} parent=1 // pred_check
      _
    $region3: #{branch_1_fun.3} parent=1 // pred_check_branch
      %9 = sbr.rel (0) target = $region5
    $region4: #{branch_1_fun.3} parent=1 // pred_region
      _
    $region5: #{branch_1_fun.3} parent=1 // pred_fallthru
      _
    // Predicated region
    $region6: #{branch_1_fun.3} parent=1 // pred_check
      _
    $region7: #{branch_1_fun.3} parent=1 // pred_check_branch
      %11 = sbr.rel (0) target = $region9
    $region8: #{branch_1_fun.3} parent=1 // pred_region
      _
    $region9: #{branch_1_fun.3} parent=1 // pred_fallthru
      _
    %v12 = vld [vmem:[%s0] sm:$0xff]
    %v13 = vld [vmem:[%s0 + $0x8] sm:$0xff]
    %v14 = vld [vmem:[%s1] sm:$0xff]
    %v15 = vld [vmem:[%s1 + $0x8] sm:$0xff]
    %17 = vset.pattern.permute.xlu0 0
    %18 = vperm.xlu0 %17, %v14
    %v19 = vpop.permute.xlu0 %18
    %22 = vset.pattern.permute.xlu0 0
    %23 = vperm.xlu0 %22, %v15
    %v24 = vpop.permute.xlu0 %23
    %v26 = vmul.f32 %v12, %v19
    %v27 = vmul.f32 %v13, %v24
    %vm28 = vcmask 261120
    %29 = vst.msk [vmem:[#allocation2] sm:$0xff] %vm28, %v26
    %30 = vst.msk [vmem:[#allocation2 + $0x8] sm:$0xff] %vm28, %v27
    // Predicated region
    $region10: #{branch_1_fun.3} parent=1 // pred_check
      _
    $region11: #{branch_1_fun.3} parent=1 // pred_check_branch
      %32 = sbr.rel (0) target = $region13
    $region12: #{branch_1_fun.3} parent=1 // pred_region
      %s34 = ssub.s32 256, 256
      %35 = vsyncadd [#allocation3], %s34
      %s36 = sshll.u32 [#allocation2], 4
      %s37 = int_to_ptr.vmem [resolvable:$true] %s36
      %42 = dma.vmem_to_hbm [thread:$0]  %s37, 256, %s2, [#allocation3], 128, 128, 8
    $region13: #{branch_1_fun.3} parent=1 // pred_fallthru
      _
    // Predicated region
    $region14: #{branch_1_fun.3} parent=1 // pred_check
      _
    $region15: #{branch_1_fun.3} parent=1 // pred_check_branch
      %44 = sbr.rel (0) target = $region17
    $region16: #{branch_1_fun.3} parent=1 // pred_region
      %45 = dma.done [#allocation3], 256
    $region17: #{branch_1_fun.3} parent=1 // pred_fallthru
      _
    %46 = vsyncpa [#allocation3], 1

</llo_original>
